<compile_context>
chip_gen: v7x
topology: tpu7x:2x2x1
jax: 0.10.0
libtpu: 0.0.40
codegen_flags: <defaults>
</compile_context>

<pallas_src>
import jax
import jax.numpy as jnp
from jax.experimental import pallas as pl
from jax.experimental.pallas import tpu as pltpu

_MIB = 1024 * 1024


def _pool2x2_relu(x):
    """2x2 / stride-2 max pool over the last two dims of (bt, tm, tn), then ReLU.

    Rows (sublane direction) are reduced first, halving the data before the
    single lane step.
    """
    bt, tm, tn = x.shape
    r = jnp.max(x.reshape(bt, tm // 2, 2, tn), axis=2)
    # TODO(synk): the trailing-dim-2 reshape costs one XLU lane compaction per
    # output tile; a pre-permuted column layout would make it a pure VPU max.
    p = jnp.max(r.reshape(bt, tm // 2, tn // 2, 2), axis=3)
    return jnp.maximum(p, 0.0)


def _mlp_kernel_acc(x_ref, y_ref, o_ref, acc_ref):
    """Multi-K-step kernel: resident f32 accumulator; K must be the innermost
    grid axis and marked "arbitrary" (see wrapper)."""
    k = pl.program_id(3)
    prod = jnp.einsum("bmk,bkn->bmn", x_ref[...], y_ref[...],
                      preferred_element_type=jnp.float32)

    @pl.when(k == 0)
    def _init():
        acc_ref[...] = prod          # direct store: no zero-init store + re-read

    @pl.when(k > 0)
    def _accum():
        acc_ref[...] += prod

    @pl.when(k == pl.num_programs(3) - 1)
    def _finalize():
        o_ref[...] = _pool2x2_relu(acc_ref[...]).astype(o_ref.dtype)


def _mlp_kernel_fused(x_ref, y_ref, o_ref):
    """Single-K-step kernel: matmul -> pool -> relu -> store, no scratch round trip."""
    prod = jnp.einsum("bmk,bkn->bmn", x_ref[...], y_ref[...],
                      preferred_element_type=jnp.float32)
    o_ref[...] = _pool2x2_relu(prod).astype(o_ref.dtype)


def _pick_tile(dim, candidates):
    """Largest candidate that evenly divides dim; otherwise the full dim."""
    for t in sorted(candidates, reverse=True):
        if dim >= t and dim % t == 0:
            return t
    return dim


def _vmem_capacity_bytes():
    try:
        return int(pltpu.get_tpu_info().vmem_capacity_bytes)
    except Exception:
        return 64 * _MIB  # conservative fallback (v7x per-TensorCore VMEM)


def _footprint_bytes(bt, tm, tn, tk, in_itemsize, out_itemsize, k_steps):
    """Double-buffer-aware VMEM footprint of one grid step."""
    in1 = bt * tm * tk * in_itemsize
    in2 = bt * tk * tn * in_itemsize
    out = bt * (tm // 2) * (tn // 2) * out_itemsize
    acc = bt * tm * tn * 4 if k_steps > 1 else 0
    return 2 * (in1 + in2 + out) + acc


def simple_mlp(input1: jax.Array, input2: jax.Array, *,
               use_bf16_matmul: bool = True) -> jax.Array:
    """relu(max_pool2d(input1 @ input2, kernel=2, stride=2)).

    input1: (B, M, K), input2: (B, K, N) -> (B, M//2, N//2).

    use_bf16_matmul=True (default) feeds the MXU bf16 operands (native-speed
    matmul on v5e/v6e/v7x; 3-6x faster than emulated f32) while accumulating,
    pooling and applying ReLU in f32.  Set False for exact-f32 matmul
    semantics matching the PyTorch module bit-for-bit.
    """
    B, M, K = input1.shape
    B2, K2, N = input2.shape
    assert B == B2 and K == K2
    assert M % 2 == 0 and N % 2 == 0, "max_pool2d(kernel=2, stride=2) needs even M, N"

    out_dtype = input1.dtype
    if use_bf16_matmul:
        input1 = input1.astype(jnp.bfloat16)
        input2 = input2.astype(jnp.bfloat16)
    in_itemsize = input1.dtype.itemsize
    out_itemsize = jnp.dtype(out_dtype).itemsize

    # Tile selection (falls back to the full dim for small shapes):
    #  - tm: MXU-aligned rows.
    #  - tn: multiple of 256 so the pooled output width (tn//2) is a multiple
    #    of 128 -> lane-dense (unmasked) stores; prefer 512 to halve input1
    #    re-streaming across the N sweep.
    #  - tk: reduction tile.
    tm = _pick_tile(M, (256, 128))
    tn = _pick_tile(N, (512, 256))
    tk = _pick_tile(K, (512, 256, 128))
    k_steps = K // tk

    # Device-aware VMEM budget: v5e/v6e have 128 MiB VMEM, v7x has 64 MiB per
    # TensorCore -- cap the footprint there and keep pipelining headroom.
    cap = _vmem_capacity_bytes()
    footprint_budget = 80 * _MIB if cap >= 100 * _MIB else 48 * _MIB
    vmem_limit = int(min(cap, footprint_budget + 8 * _MIB))

    # Pack as many batch elements per grid step as the budget allows
    # (amortizes the ~0.35us per-grid-step overhead on small problems).
    bt = B
    while bt > 1 and (B % bt != 0 or
                      _footprint_bytes(bt, tm, tn, tk, in_itemsize,
                                       out_itemsize, k_steps) > footprint_budget):
        bt -= 1
    bt = max(bt, 1)

    # v7x shards "parallel" grid axes across its two TensorCores: make sure the
    # grid exposes at least two parallel work units when the shape allows it.
    if (M // tm) * (N // tn) * (B // bt) < 2 and B >= 2:
        bt = B // 2
        while B % bt != 0:
            bt -= 1

    grid = (B // bt, M // tm, N // tn, k_steps)

    # HBM traffic including tile re-streaming: input1 is re-read once per N
    # tile, input2 once per M tile.
    cost = pl.CostEstimate(
        flops=2 * B * M * K * N,
        transcendentals=0,
        bytes_accessed=(input1.size * in_itemsize * (N // tn)
                        + input2.size * in_itemsize * (M // tm)
                        + B * (M // 2) * (N // 2) * out_itemsize),
    )

    in_specs = [
        pl.BlockSpec((bt, tm, tk), lambda b, i, j, k: (b, i, k)),
        pl.BlockSpec((bt, tk, tn), lambda b, i, j, k: (b, k, j)),
    ]
    out_spec = pl.BlockSpec((bt, tm // 2, tn // 2), lambda b, i, j, k: (b, i, j))

    if k_steps == 1:
        kernel = _mlp_kernel_fused
        scratch_shapes = []
    else:
        kernel = _mlp_kernel_acc
        scratch_shapes = [pltpu.VMEM((bt, tm, tn), jnp.float32)]

    # Correctness invariant: the resident accumulator / fused finalize is only
    # valid with the K (reduction) axis innermost and marked "arbitrary";
    # B/M/N tiles are independent -> "parallel" (megacore sharding).
    dimension_semantics = ("parallel", "parallel", "parallel", "arbitrary")
    assert dimension_semantics[-1] == "arbitrary" and grid[-1] == k_steps

    return pl.pallas_call(
        kernel,
        out_shape=jax.ShapeDtypeStruct((B, M // 2, N // 2), out_dtype),
        grid_spec=pltpu.PrefetchScalarGridSpec(
            num_scalar_prefetch=0,
            grid=grid,
            in_specs=in_specs,
            out_specs=out_spec,
            scratch_shapes=scratch_shapes,
        ),
        compiler_params=pltpu.CompilerParams(
            dimension_semantics=dimension_semantics,
            vmem_limit_bytes=vmem_limit,
        ),
        cost_estimate=cost,
    )(input1, input2)


def _reference(input1, input2):
    mm = jnp.einsum("bmk,bkn->bmn", input1.astype(jnp.float32),
                    input2.astype(jnp.float32))
    B, M, N = mm.shape
    pooled = jnp.max(mm.reshape(B, M // 2, 2, N // 2, 2), axis=(2, 4))
    return jnp.maximum(pooled, 0.0)


if __name__ == "__main__":
    key = jax.random.PRNGKey(0)
    k1, k2, k3, k4 = jax.random.split(key, 4)

    # Integer-valued f32 inputs are exactly representable in bf16 and their
    # K-sums are exact in f32, so the default bf16-MXU path stays bit-exact
    # against the f32 reference.

    # --- Test 1: small shapes matching the module spec (fused, single-K path). ---
    B, M, K, N = 2, 16, 32, 16
    a = jax.random.randint(k1, (B, M, K), -4, 5).astype(jnp.float32)
    b = jax.random.randint(k2, (B, K, N), -4, 5).astype(jnp.float32)
    out = jax.block_until_ready(simple_mlp(a, b))
    ref = _reference(a, b)
    assert out.shape == (B, M // 2, N // 2), out.shape
    assert out.dtype == a.dtype, out.dtype
    assert jnp.allclose(out, ref, atol=0.0, rtol=0.0), "mismatch vs reference (fused path)"

    # --- Test 2: exercises K accumulation, lane-dense tn, batch/parallel split. ---
    B, M, K, N = 2, 16, 1024, 512
    a = jax.random.randint(k3, (B, M, K), -4, 5).astype(jnp.float32)
    b = jax.random.randint(k4, (B, K, N), -4, 5).astype(jnp.float32)
    out = jax.block_until_ready(simple_mlp(a, b))
    ref = _reference(a, b)
    assert out.shape == (B, M // 2, N // 2), out.shape
    assert jnp.allclose(out, ref, atol=0.0, rtol=0.0), "mismatch vs reference (acc path)"

    # --- Test 3: exact-f32 matmul path (use_bf16_matmul=False). ---
    out_f32 = jax.block_until_ready(simple_mlp(a, b, use_bf16_matmul=False))
    assert jnp.allclose(out_f32, ref, atol=0.0, rtol=0.0), "mismatch vs reference (f32 path)"

    print("KERNEL_OK")
</pallas_src>

<mosaic_0001>
module attributes {stable_mosaic.version = 11 : i64} {
  func.func @_mlp_kernel_fused(%arg0: i32, %arg1: i32, %arg2: i32, %arg3: i32, %arg4: memref<1x16x32xbf16, #tpu.memory_space<vmem>>, %arg5: memref<1x32x16xbf16, #tpu.memory_space<vmem>>, %arg6: memref<1x8x8xf32, #tpu.memory_space<vmem>>) attributes {dimension_semantics = [#tpu.dimension_semantics<parallel>, #tpu.dimension_semantics<parallel>, #tpu.dimension_semantics<parallel>, #tpu.dimension_semantics<arbitrary>], iteration_bounds = array<i64: 2, 1, 1, 1>, scalar_prefetch = 0 : i64, scratch_operands = 0 : i64, tpu.core_type = #tpu.core_type<tc>, window_params = [{transform_indices = @transform_0, window_bounds = array<i64: 1, 16, 32>}, {transform_indices = @transform_1, window_bounds = array<i64: 1, 32, 16>}, {transform_indices = @transform_2, window_bounds = array<i64: 1, 8, 8>}]} {
    %c0 = arith.constant 0 : index
    %c0_0 = arith.constant 0 : index
    %c0_1 = arith.constant 0 : index
    %0 = vector.load %arg4[%c0, %c0_0, %c0_1] : memref<1x16x32xbf16, #tpu.memory_space<vmem>>, vector<1x16x32xbf16>
    %c0_2 = arith.constant 0 : index
    %c0_3 = arith.constant 0 : index
    %c0_4 = arith.constant 0 : index
    %1 = vector.load %arg5[%c0_2, %c0_3, %c0_4] : memref<1x32x16xbf16, #tpu.memory_space<vmem>>, vector<1x32x16xbf16>
    "tpu.trace_start"() <{level = 10 : i32, message = "bmk,bkn->bmn"}> : () -> ()
    %cst = arith.constant dense<0.000000e+00> : vector<1x16x16xf32>
    %2 = tpu.matmul %0, %1, %cst {dimension_numbers = #tpu.dot_dimension_numbers<[2], [1], [1], [2], [0, 0, 0, 1, 1, 2], [0], [0]>} : vector<1x16x32xbf16>, vector<1x32x16xbf16>, vector<1x16x16xf32> -> vector<1x16x16xf32>
    "tpu.trace_stop"() : () -> ()
    %3 = vector.shape_cast %2 : vector<1x16x16xf32> to vector<1x8x2x16xf32>
    %cst_5 = arith.constant dense<0xFF800000> : vector<1x8x16xf32>
    %4 = vector.multi_reduction <maximumf>, %3, %cst_5 [2] : vector<1x8x2x16xf32> to vector<1x8x16xf32>
    %5 = vector.shape_cast %4 : vector<1x8x16xf32> to vector<1x8x8x2xf32>
    %cst_6 = arith.constant dense<0xFF800000> : vector<1x8x8xf32>
    %6 = vector.multi_reduction <maximumf>, %5, %cst_6 [3] : vector<1x8x8x2xf32> to vector<1x8x8xf32>
    %cst_7 = arith.constant 0.000000e+00 : f32
    %7 = vector.broadcast %cst_7 : f32 to vector<1x8x8xf32>
    %8 = arith.maximumf %6, %7 : vector<1x8x8xf32>
    %c0_8 = arith.constant 0 : index
    %c0_9 = arith.constant 0 : index
    %c0_10 = arith.constant 0 : index
    %9 = vector.load %arg6[%c0_8, %c0_9, %c0_10] : memref<1x8x8xf32, #tpu.memory_space<vmem>>, vector<1x8x8xf32>
    tpu.vector_store %arg6[%c0_8, %c0_9, %c0_10], %8 {strides = array<i32>} : memref<1x8x8xf32, #tpu.memory_space<vmem>>, vector<1x8x8xf32>,
    return
  }
  func.func @transform_0(%arg0: i32, %arg1: i32, %arg2: i32, %arg3: i32) -> (i32, i32, i32) {
    %c0_i32 = arith.constant 0 : i32
    return %arg0, %arg1, %arg3 : i32, i32, i32
  }
  func.func @transform_1(%arg0: i32, %arg1: i32, %arg2: i32, %arg3: i32) -> (i32, i32, i32) {
    %c0_i32 = arith.constant 0 : i32
    return %arg0, %arg3, %arg2 : i32, i32, i32
  }
  func.func @transform_2(%arg0: i32, %arg1: i32, %arg2: i32, %arg3: i32) -> (i32, i32, i32) {
    %c0_i32 = arith.constant 0 : i32
    return %arg0, %arg1, %arg2 : i32, i32, i32
  }
}

</mosaic_0001>

<llo_original>
// kernel: tpu_custom_call.1
$region0: #{tpu_custom_call.1}
  #allocation0 [shape = 'u32[]', space=smem, size = 0x4, offset = 0x4, fixed_abs, tag = 'smem constant byte address 0x4 - core index']
  #allocation1 [shape = 'u32[144,128]{1,0:T(1,128)}', space=vmem, size = 0x12000, scoped, tag = 'internal scratch']
  %s0 = inlined_call_operand.vmem [shape: bf16[2,16,32], index: 0, kind: input, shape index: {}]
  %s1 = inlined_call_operand.vmem [shape: bf16[2,32,16], index: 1, kind: input, shape index: {}]
  %s2 = inlined_call_operand.hbm [shape: f32[2,8,8], index: 2, kind: output, shape index: {}]
  %s3 = sld [smem:[#allocation0]]
  $region41: #{tpu_custom_call.1} parent=0
    _
  %s5 = ssub.s32 1, %s3
  %s6 = scalar_select 0, %s5, %s3
  $region1: #{tpu_custom_call.1} parent=0
    #allocation2 [shape = 'u8[8192]{0}', space=vmem, size = 0x2000, scoped, tag = 'output window, operand 0']
    #allocation3 [shape = 's32[2]{0}', space=sflag, size = 0x8, scoped, tag = 'scoped memory for tpu_custom_call.1']
    %7 = vsyncpa [#allocation3], 0
    %s8 = scalar_lea.sflag [#allocation3], 1
    %9 = vsyncpa %s8, 0
    loop: start=0, step=1, limit=4
    $region2: #{tpu_custom_call.1} parent=1 // loop_pre_header
      _
    $region3: #{tpu_custom_call.1} parent=1 // loop_header
      %s11 = sphi 0, %s15
      %p12 = scmp.ge.s32.totalorder %s11, 4
      %s18 = sphi 0, %s44
      %s19 = sphi 0, %s40
      %s20 = sphi 0, %s36
      %s21 = sphi 0, %s32
      %s22 = sphi 0, %s18
      %s23 = sphi 0, %s19
      %s24 = sphi 0, %s20
      %s25 = sphi 0, %s21
      %s26 = sphi 0, %s22
      %s27 = sphi 0, %s23
      %s28 = sphi 0, %s24
      %s29 = sphi 0, %s25
      %s51 = sphi 0, %s53
      %s54 = sphi 0, %s51
      %s55 = sphi 0, %s54
      %s71 = sphi 0, %s55
      %s81 = sphi 0, %s83
      %s84 = sphi 0, %s81
      %s85 = sphi 0, %s84
      %s101 = sphi 0, %s85
      %s111 = sphi 0, %s113
      %s114 = sphi 0, %s111
      %s115 = sphi 0, %s114
      %s131 = sphi 0, %s115
    $region4: #{tpu_custom_call.1} parent=1 // loop_header_branch
      %14 = sbr.rel (%p12) target = $region8
    $region5: #{tpu_custom_call.1} parent=1 // loop_body
      %s16 = ssub.s32 %s11, 1
      %s17 = ssub.s32 %s11, 2
      %s30 = sadd.s32 1, %s21
      %p31 = scmp.ge.s32.totalorder %s30, 1
      %s32 = scalar_select %p31, 0, %s30
      %s33 = sadd.s32 1, %s20
      %s34 = scalar_select %p31, %s33, %s20
      %p35 = scmp.ge.s32.totalorder %s34, 1
      %s36 = scalar_select %p35, 0, %s34
      %s37 = sadd.s32 1, %s19
      %s38 = scalar_select %p35, %s37, %s19
      %p39 = scmp.ge.s32.totalorder %s38, 1
      %s40 = scalar_select %p39, 0, %s38
      %s41 = sadd.s32 1, %s18
      %s42 = scalar_select %p39, %s41, %s18
      %p43 = scmp.ge.s32.totalorder %s42, 2
      %s44 = scalar_select %p43, 0, %s42
      %s45 = ssub.s32 %s18, %s44
      %s46 = ssub.s32 %s19, %s40
      %s47 = sor.u32 %s45, %s46
      %s48 = ssub.s32 %s21, %s32
      %s49 = sor.u32 %s47, %s48
      %p50 = scmp.eq.s32.totalorder %s49, 0
      %s52 = sadd.s32 %s51, 1
      %s53 = scalar_select %p50, %s51, %s52
      %p56 = pneg %p50
      %p57 = scmp.eq.s32.totalorder %s11, 1
      %p58 = por %p56, %p57
      %p59 = scmp.ne.s32.totalorder %s51, %s54
      %p60 = scmp.eq.s32.totalorder %s11, 0
      %p61 = por %p59, %p60
      %p62 = scmp.ne.s32.totalorder %s51, %s54
      %p63 = scmp.eq.s32.totalorder %s16, 1
      %p64 = por %p62, %p63
      %p65 = scmp.ne.s32.totalorder %s54, %s55
      %p66 = scmp.eq.s32.totalorder %s16, 0
      %p67 = por %p65, %p66
      %p68 = scmp.ne.s32.totalorder %s54, %s55
      %p69 = scmp.eq.s32.totalorder %s17, 1
      %p70 = por %p68, %p69
      %p72 = scmp.ne.s32.totalorder %s55, %s71
      %p73 = scmp.eq.s32.totalorder %s17, 0
      %p74 = por %p72, %p73
      %s75 = ssub.s32 %s18, %s44
      %s76 = ssub.s32 %s21, %s32
      %s77 = sor.u32 %s75, %s76
      %s78 = ssub.s32 %s20, %s36
      %s79 = sor.u32 %s77, %s78
      %p80 = scmp.eq.s32.totalorder %s79, 0
      %s82 = sadd.s32 %s81, 1
      %s83 = scalar_select %p80, %s81, %s82
      %p86 = pneg %p80
      %p87 = scmp.eq.s32.totalorder %s11, 1
      %p88 = por %p86, %p87
      %p89 = scmp.ne.s32.totalorder %s81, %s84
      %p90 = scmp.eq.s32.totalorder %s11, 0
      %p91 = por %p89, %p90
      %p92 = scmp.ne.s32.totalorder %s81, %s84
      %p93 = scmp.eq.s32.totalorder %s16, 1
      %p94 = por %p92, %p93
      %p95 = scmp.ne.s32.totalorder %s84, %s85
      %p96 = scmp.eq.s32.totalorder %s16, 0
      %p97 = por %p95, %p96
      %p98 = scmp.ne.s32.totalorder %s84, %s85
      %p99 = scmp.eq.s32.totalorder %s17, 1
      %p100 = por %p98, %p99
      %p102 = scmp.ne.s32.totalorder %s85, %s101
      %p103 = scmp.eq.s32.totalorder %s17, 0
      %p104 = por %p102, %p103
      %s105 = ssub.s32 %s18, %s44
      %s106 = ssub.s32 %s19, %s40
      %s107 = sor.u32 %s105, %s106
      %s108 = ssub.s32 %s20, %s36
      %s109 = sor.u32 %s107, %s108
      %p110 = scmp.eq.s32.totalorder %s109, 0
      %s112 = sadd.s32 %s111, 1
      %s113 = scalar_select %p110, %s111, %s112
      %p116 = pneg %p110
      %p117 = scmp.eq.s32.totalorder %s11, 1
      %p118 = por %p116, %p117
      %p119 = scmp.ne.s32.totalorder %s111, %s114
      %p120 = scmp.eq.s32.totalorder %s11, 0
      %p121 = por %p119, %p120
      %p122 = scmp.ne.s32.totalorder %s111, %s114
      %p123 = scmp.eq.s32.totalorder %s16, 1
      %p124 = por %p122, %p123
      %p125 = scmp.ne.s32.totalorder %s114, %s115
      %p126 = scmp.eq.s32.totalorder %s16, 0
      %p127 = por %p125, %p126
      %p128 = scmp.ne.s32.totalorder %s114, %s115
      %p129 = scmp.eq.s32.totalorder %s17, 1
      %p130 = por %p128, %p129
      %p132 = scmp.ne.s32.totalorder %s115, %s131
      %p133 = scmp.eq.s32.totalorder %s17, 0
      %p134 = por %p132, %p133
      %p135 = scmp.le.s32.totalorder 1, %s11
      %p136 = scmp.lt.s32.totalorder %s11, 3
      %p137 = pnand %p135, %p136
      %p138 = pneg %p137
      // Predicated region
      $region9: #{tpu_custom_call.1} parent=5 // pred_check
        _
      $region10: #{tpu_custom_call.1} parent=5 // pred_check_branch
        %140 = sbr.rel (%p137) target = $region12
      $region11: #{tpu_custom_call.1} parent=5 // pred_region
        %s141 = ssub.s32 %s11, 1
      $region12: #{tpu_custom_call.1} parent=5 // pred_fallthru
        _
      %p142 = scmp.lt.s32.totalorder %s11, 2
      // Predicated region
      $region13: #{tpu_custom_call.1} parent=5 // pred_check
        %p143 = pneg %p142
      $region14: #{tpu_custom_call.1} parent=5 // pred_check_branch
        %145 = sbr.rel (%p143) target = $region16
      $region15: #{tpu_custom_call.1} parent=5 // pred_region
        // Predicated region
        $region17: #{tpu_custom_call.1} parent=15 // pred_check
          %p146 = pneg %p61
        $region18: #{tpu_custom_call.1} parent=15 // pred_check_branch
          %148 = sbr.rel (%p146) target = $region20
        $region19: #{tpu_custom_call.1} parent=15 // pred_region
          %s149 = smul.u32 2, %s19
          %p150 = scmp.lt.s32.totalorder %s18, 1
          %s151 = scalar_select %p150, %s18, 1
          %p152 = scmp.lt.s32.totalorder %s149, 1
          %s153 = scalar_select %p152, %s149, 1
          %p154 = scmp.lt.s32.totalorder %s21, 0
          %s155 = scalar_select %p154, %s21, 0
          %s156 = sadd.s32 %s155, %s153
          %s157 = smul.addr %s151, 2
          %s158 = sadd.s32 %s156, %s157
          %s159 = smul.addr %s158, 4
          %s160 = scalar_lea.vmem %s0, %s159
          %s161 = smul.u32 2, %s19
        $region20: #{tpu_custom_call.1} parent=15 // pred_fallthru
          _
        // Predicated region
        $region21: #{tpu_custom_call.1} parent=15 // pred_check
          %p162 = pneg %p91
        $region22: #{tpu_custom_call.1} parent=15 // pred_check_branch
          %164 = sbr.rel (%p162) target = $region24
        $region23: #{tpu_custom_call.1} parent=15 // pred_region
          %s165 = smul.u32 4, %s21
          %p166 = scmp.lt.s32.totalorder %s18, 1
          %s167 = scalar_select %p166, %s18, 1
          %p168 = scmp.lt.s32.totalorder %s165, 3
          %s169 = scalar_select %p168, %s165, 3
          %p170 = scmp.lt.s32.totalorder %s20, 0
          %s171 = scalar_select %p170, %s20, 0
          %s172 = sadd.s32 %s171, %s169
          %s173 = smul.addr %s167, 4
          %s174 = sadd.s32 %s172, %s173
          %s175 = smul.addr %s174, 4
          %s176 = scalar_lea.vmem %s1, %s175
          %s177 = smul.u32 4, %s21
        $region24: #{tpu_custom_call.1} parent=15 // pred_fallthru
          _
      $region16: #{tpu_custom_call.1} parent=5 // pred_fallthru
        _
      %p178 = scmp.le.s32.totalorder 1, %s11
      %p179 = scmp.lt.s32.totalorder %s11, 3
      %p180 = pnand %p178, %p179
      %p181 = pneg %p180
      // Predicated region
      $region25: #{tpu_custom_call.1} parent=5 // pred_check
        _
      $region26: #{tpu_custom_call.1} parent=5 // pred_check_branch
        %183 = sbr.rel (%p180) target = $region28
      $region27: #{tpu_custom_call.1} parent=5 // pred_region
        %s184 = ssub.s32 %s11, 1
        %s185 = smul.u32 2, %s23
        %p186 = scmp.lt.s32.totalorder %s22, 1
        %s187 = scalar_select %p186, %s22, 1
        %p188 = scmp.lt.s32.totalorder %s185, 1
        %s189 = scalar_select %p188, %s185, 1
        %p190 = scmp.lt.s32.totalorder %s25, 0
        %s191 = scalar_select %p190, %s25, 0
        %s192 = sadd.s32 %s191, %s189
        %s193 = smul.addr %s187, 2
        %s194 = sadd.s32 %s192, %s193
        %s195 = smul.addr %s194, 4
        %s196 = scalar_lea.vmem %s0, %s195
        %p197 = pneg %p67
        %p198 = pneg %p64
        %s199 = smul.u32 4, %s25
        %p200 = scmp.lt.s32.totalorder %s22, 1
        %s201 = scalar_select %p200, %s22, 1
        %p202 = scmp.lt.s32.totalorder %s199, 3
        %s203 = scalar_select %p202, %s199, 3
        %p204 = scmp.lt.s32.totalorder %s24, 0
        %s205 = scalar_select %p204, %s24, 0
        %s206 = sadd.s32 %s205, %s203
        %s207 = smul.addr %s201, 4
        %s208 = sadd.s32 %s206, %s207
        %s209 = smul.addr %s208, 4
        %s210 = scalar_lea.vmem %s1, %s209
        %p211 = pneg %p97
        %p212 = pneg %p94
        %p213 = pneg %p127
        %p214 = pneg %p124
        %s215 = sand.u32 %s114, 1
        %s216 = scalar_lea.sflag [#allocation3], %s215
        %s217 = sand.u32 %s114, 1
        %s218 = smul.addr %s217, 8
        %s219 = scalar_lea.vmem [#allocation2], %s218
        %s220 = smul.u32 2, %s23
        %p221 = scmp.lt.s32.totalorder %s22, 1
        %s222 = scalar_select %p221, %s22, 1
        %p223 = scmp.lt.s32.totalorder %s220, 1
        %s224 = scalar_select %p223, %s220, 1
        %p225 = scmp.lt.s32.totalorder %s25, 0
        %s226 = scalar_select %p225, %s25, 0
        %s227 = sadd.s32 %s226, %s224
        %s228 = smul.addr %s222, 2
        %s229 = sadd.s32 %s227, %s228
        %s230 = smul.addr %s229, 4
        %s231 = scalar_lea.vmem %s0, %s230
        %s232 = smul.u32 2, %s23
        %s233 = smul.u32 4, %s25
        %p234 = scmp.lt.s32.totalorder %s22, 1
        %s235 = scalar_select %p234, %s22, 1
        %p236 = scmp.lt.s32.totalorder %s233, 3
        %s237 = scalar_select %p236, %s233, 3
        %p238 = scmp.lt.s32.totalorder %s24, 0
        %s239 = scalar_select %p238, %s24, 0
        %s240 = sadd.s32 %s239, %s237
        %s241 = smul.addr %s235, 4
        %s242 = sadd.s32 %s240, %s241
        %s243 = smul.addr %s242, 4
        %s244 = scalar_lea.vmem %s1, %s243
        %s245 = smul.u32 4, %s25
        %v247 = vld [vmem:[%s231] sm:$0xf]
        %v248 = vld [vmem:[%s231 + $0x4] sm:$0xf]
        %v249 = vld [vmem:[%s244] sm:$0xf]
        %v250 = vld [vmem:[%s244 + $0x4] sm:$0xf]
        %v251 = vld [vmem:[%s244 + $0x8] sm:$0xf]
        %v252 = vld [vmem:[%s244 + $0xc] sm:$0xf]
        %v255 = vunpack.c.l.b16 %v247
        %v256 = vunpack.c.l.b16 %v248
        %v257 = vpack.c.b16 %v256, %v255
        %v262 = vunpack.c.l.b16 %v249
        %v263 = vunpack.c.l.b16 %v250
        %v264 = vunpack.c.l.b16 %v251
        %v265 = vunpack.c.l.b16 %v252
        %v266 = vpack.c.b16 %v263, %v262
        %v267 = vpack.c.b16 %v265, %v264
        %vm270 = vcmask 261120
        %v272 = vsel %vm270, %v257, 0
        %274 = vmatprep.subr.bf16.mxu0 0
        %275 = vmatpush1.bf16.msra.mxu0 %v266
        %276 = vmatprep.subr.bf16.mxu0 0
        %277 = vmatpush1.bf16.msra.mxu0 %v267
        %278 = vmatprep.subr.bf16.mxu0 0
        %279 = vmatpush1.bf16.msra.mxu0 0
        %280 = vmatprep.subr.bf16.mxu0 0
        %281 = vmatpush1.bf16.msra.mxu0 0
        %282 = vmatprep.subr.bf16.mxu0 0
        %283 = vmatpush1.bf16.msra.mxu0 0
        %284 = vmatprep.subr.bf16.mxu0 0
        %285 = vmatpush1.bf16.msra.mxu0 0
        %286 = vmatprep.subr.bf16.mxu0 0
        %287 = vmatpush1.bf16.msra.mxu0 0
        %288 = vmatprep.subr.bf16.mxu0 0
        %289 = vmatpush1.bf16.msra.mxu0 0
        %290 = vmatprep.subr.bf16.mxu0 0
        %291 = vmatpush1.bf16.msra.mxu0 0
        %292 = vmatprep.subr.bf16.mxu0 0
        %293 = vmatpush1.bf16.msra.mxu0 0
        %294 = vmatprep.subr.bf16.mxu0 0
        %295 = vmatpush1.bf16.msra.mxu0 0
        %296 = vmatprep.subr.bf16.mxu0 0
        %297 = vmatpush1.bf16.msra.mxu0 0
        %298 = vmatprep.subr.bf16.mxu0 0
        %299 = vmatpush1.bf16.msra.mxu0 0
        %300 = vmatprep.subr.bf16.mxu0 0
        %301 = vmatpush1.bf16.msra.mxu0 0
        %302 = vmatprep.subr.bf16.mxu0 0
        %303 = vmatpush1.bf16.msra.mxu0 0
        %304 = vmatprep.subr.bf16.mxu0 0
        %305 = vmatpush1.bf16.msra.mxu0 0
        %306 = vmatprep.mubr.bf16.mxu0 0
        %307 = vmatmul.mubr.bf16.gmra.mrb[0].mxu0 %v272
        %v308 = vpop.f32.mrb[0].mxu0
        %v309 = vadd.f32 0.0, %v308
        %v310 = vpop.f32.mrb[0].mxu0
        %v311 = vpop.f32.mrb[0].mxu0
        %v312 = vadd.f32 0.0, %v311
        %v313 = vpop.f32.mrb[0].mxu0
        %314 = vdwg.mxu0
        %v317 = vcombine.high %v309, %v309
        %v319 = vunpack.c.l.s4 1983009808
        %v320 = vunpack.c.0.s8 %v319
        %v321 = vlaneseq
        %v322 = vshrl.u32 %v321, 7
        %v323 = vsub.s32 %v320, %v322
        %v324 = vrot.slane %v309, %v323
        %v326 = vunpack.c.l.s4 1983009808
        %v327 = vunpack.c.0.s8 %v326
        %v328 = vlaneseq
        %v329 = vshrl.u32 %v328, 7
        %v330 = vsub.s32 %v327, %v329
        %v331 = vrot.slane %v317, %v330
        %v332 = vcombine.high %v324, %v324
        %v333 = vcombine.high %v331, %v331
        %v334 = vcombine.high %v312, %v312
        %v336 = vunpack.c.l.s4 1983009808
        %v337 = vunpack.c.0.s8 %v336
        %v338 = vlaneseq
        %v339 = vshrl.u32 %v338, 7
        %v340 = vsub.s32 %v337, %v339
        %v341 = vrot.slane %v312, %v340
        %v343 = vunpack.c.l.s4 1983009808
        %v344 = vunpack.c.0.s8 %v343
        %v345 = vlaneseq
        %v346 = vshrl.u32 %v345, 7
        %v347 = vsub.s32 %v344, %v346
        %v348 = vrot.slane %v334, %v347
        %v349 = vcombine.high %v341, %v341
        %v350 = vcombine.high %v348, %v348
        %vm359 = vcmask 123904
        %v360 = vsel %vm359, %v324, -inf
        %v361 = vrot.slane %v360, 4
        %v362 = vmax.f32 %v360, %v361
        %v363 = vrot.slane %v362, 2
        %v364 = vmax.f32 %v362, %v363
        %v365 = vrot.slane %v364, 1
        %v366 = vmax.f32 %v364, %v365
        %v367 = vsel %vm359, %v332, -inf
        %v368 = vrot.slane %v367, 4
        %v369 = vmax.f32 %v367, %v368
        %v370 = vrot.slane %v369, 2
        %v371 = vmax.f32 %v369, %v370
        %v372 = vrot.slane %v371, 1
        %v373 = vmax.f32 %v371, %v372
        %v374 = vsel %vm359, %v331, -inf
        %v375 = vrot.slane %v374, 4
        %v376 = vmax.f32 %v374, %v375
        %v377 = vrot.slane %v376, 2
        %v378 = vmax.f32 %v376, %v377
        %v379 = vrot.slane %v378, 1
        %v380 = vmax.f32 %v378, %v379
        %v381 = vsel %vm359, %v333, -inf
        %v382 = vrot.slane %v381, 4
        %v383 = vmax.f32 %v381, %v382
        %v384 = vrot.slane %v383, 2
        %v385 = vmax.f32 %v383, %v384
        %v386 = vrot.slane %v385, 1
        %v387 = vmax.f32 %v385, %v386
        %v388 = vsel %vm359, %v341, -inf
        %v389 = vrot.slane %v388, 4
        %v390 = vmax.f32 %v388, %v389
        %v391 = vrot.slane %v390, 2
        %v392 = vmax.f32 %v390, %v391
        %v393 = vrot.slane %v392, 1
        %v394 = vmax.f32 %v392, %v393
        %v395 = vsel %vm359, %v349, -inf
        %v396 = vrot.slane %v395, 4
        %v397 = vmax.f32 %v395, %v396
        %v398 = vrot.slane %v397, 2
        %v399 = vmax.f32 %v397, %v398
        %v400 = vrot.slane %v399, 1
        %v401 = vmax.f32 %v399, %v400
        %v402 = vsel %vm359, %v348, -inf
        %v403 = vrot.slane %v402, 4
        %v404 = vmax.f32 %v402, %v403
        %v405 = vrot.slane %v404, 2
        %v406 = vmax.f32 %v404, %v405
        %v407 = vrot.slane %v406, 1
        %v408 = vmax.f32 %v406, %v407
        %v409 = vsel %vm359, %v350, -inf
        %v410 = vrot.slane %v409, 4
        %v411 = vmax.f32 %v409, %v410
        %v412 = vrot.slane %v411, 2
        %v413 = vmax.f32 %v411, %v412
        %v414 = vrot.slane %v413, 1
        %v415 = vmax.f32 %v413, %v414
        %424 = vrot.lane.b32.xlu0 %v366, 126
        %v425 = vpop.permute.xlu0 %424
        %426 = vrot.lane.b32.xlu0 %v373, 126
        %v427 = vpop.permute.xlu0 %426
        %428 = vrot.lane.b32.xlu0 %v380, 126
        %v429 = vpop.permute.xlu0 %428
        %430 = vrot.lane.b32.xlu0 %v387, 126
        %v431 = vpop.permute.xlu0 %430
        %432 = vrot.lane.b32.xlu0 %v394, 126
        %v433 = vpop.permute.xlu0 %432
        %434 = vrot.lane.b32.xlu0 %v401, 126
        %v435 = vpop.permute.xlu0 %434
        %436 = vrot.lane.b32.xlu0 %v408, 126
        %v437 = vpop.permute.xlu0 %436
        %438 = vrot.lane.b32.xlu0 %v415, 126
        %v439 = vpop.permute.xlu0 %438
        %440 = vrot.lane.b32.xlu0 %v366, 124
        %v441 = vpop.permute.xlu0 %440
        %442 = vrot.lane.b32.xlu0 %v373, 124
        %v443 = vpop.permute.xlu0 %442
        %444 = vrot.lane.b32.xlu0 %v380, 124
        %v445 = vpop.permute.xlu0 %444
        %446 = vrot.lane.b32.xlu0 %v387, 124
        %v447 = vpop.permute.xlu0 %446
        %448 = vrot.lane.b32.xlu0 %v394, 124
        %v449 = vpop.permute.xlu0 %448
        %450 = vrot.lane.b32.xlu0 %v401, 124
        %v451 = vpop.permute.xlu0 %450
        %452 = vrot.lane.b32.xlu0 %v408, 124
        %v453 = vpop.permute.xlu0 %452
        %454 = vrot.lane.b32.xlu0 %v415, 124
        %v455 = vpop.permute.xlu0 %454
        %456 = vrot.lane.b32.xlu0 %v366, 122
        %v457 = vpop.permute.xlu0 %456
        %458 = vrot.lane.b32.xlu0 %v373, 122
        %v459 = vpop.permute.xlu0 %458
        %460 = vrot.lane.b32.xlu0 %v380, 122
        %v461 = vpop.permute.xlu0 %460
        %462 = vrot.lane.b32.xlu0 %v387, 122
        %v463 = vpop.permute.xlu0 %462
        %464 = vrot.lane.b32.xlu0 %v394, 122
        %v465 = vpop.permute.xlu0 %464
        %466 = vrot.lane.b32.xlu0 %v401, 122
        %v467 = vpop.permute.xlu0 %466
        %468 = vrot.lane.b32.xlu0 %v408, 122
        %v469 = vpop.permute.xlu0 %468
        %470 = vrot.lane.b32.xlu0 %v415, 122
        %v471 = vpop.permute.xlu0 %470
        %472 = vrot.lane.b32.xlu0 %v366, 120
        %v473 = vpop.permute.xlu0 %472
        %474 = vrot.lane.b32.xlu0 %v373, 120
        %v475 = vpop.permute.xlu0 %474
        %476 = vrot.lane.b32.xlu0 %v380, 120
        %v477 = vpop.permute.xlu0 %476
        %478 = vrot.lane.b32.xlu0 %v387, 120
        %v479 = vpop.permute.xlu0 %478
        %480 = vrot.lane.b32.xlu0 %v394, 120
        %v481 = vpop.permute.xlu0 %480
        %482 = vrot.lane.b32.xlu0 %v401, 120
        %v483 = vpop.permute.xlu0 %482
        %484 = vrot.lane.b32.xlu0 %v408, 120
        %v485 = vpop.permute.xlu0 %484
        %486 = vrot.lane.b32.xlu0 %v415, 120
        %v487 = vpop.permute.xlu0 %486
        %488 = vrot.lane.b32.xlu0 %v366, 118
        %v489 = vpop.permute.xlu0 %488
        %490 = vrot.lane.b32.xlu0 %v373, 118
        %v491 = vpop.permute.xlu0 %490
        %492 = vrot.lane.b32.xlu0 %v380, 118
        %v493 = vpop.permute.xlu0 %492
        %494 = vrot.lane.b32.xlu0 %v387, 118
        %v495 = vpop.permute.xlu0 %494
        %496 = vrot.lane.b32.xlu0 %v394, 118
        %v497 = vpop.permute.xlu0 %496
        %498 = vrot.lane.b32.xlu0 %v401, 118
        %v499 = vpop.permute.xlu0 %498
        %500 = vrot.lane.b32.xlu0 %v408, 118
        %v501 = vpop.permute.xlu0 %500
        %502 = vrot.lane.b32.xlu0 %v415, 118
        %v503 = vpop.permute.xlu0 %502
        %504 = vrot.lane.b32.xlu0 %v366, 116
        %v505 = vpop.permute.xlu0 %504
        %506 = vrot.lane.b32.xlu0 %v373, 116
        %v507 = vpop.permute.xlu0 %506
        %508 = vrot.lane.b32.xlu0 %v380, 116
        %v509 = vpop.permute.xlu0 %508
        %510 = vrot.lane.b32.xlu0 %v387, 116
        %v511 = vpop.permute.xlu0 %510
        %512 = vrot.lane.b32.xlu0 %v394, 116
        %v513 = vpop.permute.xlu0 %512
        %514 = vrot.lane.b32.xlu0 %v401, 116
        %v515 = vpop.permute.xlu0 %514
        %516 = vrot.lane.b32.xlu0 %v408, 116
        %v517 = vpop.permute.xlu0 %516
        %518 = vrot.lane.b32.xlu0 %v415, 116
        %v519 = vpop.permute.xlu0 %518
        %520 = vrot.lane.b32.xlu0 %v366, 114
        %v521 = vpop.permute.xlu0 %520
        %522 = vrot.lane.b32.xlu0 %v373, 114
        %v523 = vpop.permute.xlu0 %522
        %524 = vrot.lane.b32.xlu0 %v380, 114
        %v525 = vpop.permute.xlu0 %524
        %526 = vrot.lane.b32.xlu0 %v387, 114
        %v527 = vpop.permute.xlu0 %526
        %528 = vrot.lane.b32.xlu0 %v394, 114
        %v529 = vpop.permute.xlu0 %528
        %530 = vrot.lane.b32.xlu0 %v401, 114
        %v531 = vpop.permute.xlu0 %530
        %532 = vrot.lane.b32.xlu0 %v408, 114
        %v533 = vpop.permute.xlu0 %532
        %534 = vrot.lane.b32.xlu0 %v415, 114
        %v535 = vpop.permute.xlu0 %534
        %v536 = vrot.slane %v373, 7
        %vm537 = vcmask 1041409
        %v538 = vsel %vm537, %v536, %v366
        %v539 = vrot.slane %v380, 6
        %vm540 = vcmask 1042434
        %v541 = vsel %vm540, %v539, %v538
        %v542 = vrot.slane %v387, 5
        %vm543 = vcmask 1043459
        %v544 = vsel %vm543, %v542, %v541
        %v545 = vrot.slane %v394, 4
        %vm546 = vcmask 1044484
        %v547 = vsel %vm546, %v545, %v544
        %v548 = vrot.slane %v401, 3
        %vm549 = vcmask 1045509
        %v550 = vsel %vm549, %v548, %v547
        %v551 = vrot.slane %v408, 2
        %vm552 = vcmask 1046534
        %v553 = vsel %vm552, %v551, %v550
        %v554 = vrot.slane %v415, 1
        %vm555 = vcmask 1047559
        %v556 = vsel %vm555, %v554, %v553
        %v557 = vrot.slane %v427, 7
        %v558 = vsel %vm537, %v557, %v425
        %v559 = vrot.slane %v429, 6
        %v560 = vsel %vm540, %v559, %v558
        %v561 = vrot.slane %v431, 5
        %v562 = vsel %vm543, %v561, %v560
        %v563 = vrot.slane %v433, 4
        %v564 = vsel %vm546, %v563, %v562
        %v565 = vrot.slane %v435, 3
        %v566 = vsel %vm549, %v565, %v564
        %v567 = vrot.slane %v437, 2
        %v568 = vsel %vm552, %v567, %v566
        %v569 = vrot.slane %v439, 1
        %v570 = vsel %vm555, %v569, %v568
        %v571 = vrot.slane %v443, 7
        %v572 = vsel %vm537, %v571, %v441
        %v573 = vrot.slane %v445, 6
        %v574 = vsel %vm540, %v573, %v572
        %v575 = vrot.slane %v447, 5
        %v576 = vsel %vm543, %v575, %v574
        %v577 = vrot.slane %v449, 4
        %v578 = vsel %vm546, %v577, %v576
        %v579 = vrot.slane %v451, 3
        %v580 = vsel %vm549, %v579, %v578
        %v581 = vrot.slane %v453, 2
        %v582 = vsel %vm552, %v581, %v580
        %v583 = vrot.slane %v455, 1
        %v584 = vsel %vm555, %v583, %v582
        %v585 = vrot.slane %v459, 7
        %v586 = vsel %vm537, %v585, %v457
        %v587 = vrot.slane %v461, 6
        %v588 = vsel %vm540, %v587, %v586
        %v589 = vrot.slane %v463, 5
        %v590 = vsel %vm543, %v589, %v588
        %v591 = vrot.slane %v465, 4
        %v592 = vsel %vm546, %v591, %v590
        %v593 = vrot.slane %v467, 3
        %v594 = vsel %vm549, %v593, %v592
        %v595 = vrot.slane %v469, 2
        %v596 = vsel %vm552, %v595, %v594
        %v597 = vrot.slane %v471, 1
        %v598 = vsel %vm555, %v597, %v596
        %v599 = vrot.slane %v475, 7
        %v600 = vsel %vm537, %v599, %v473
        %v601 = vrot.slane %v477, 6
        %v602 = vsel %vm540, %v601, %v600
        %v603 = vrot.slane %v479, 5
        %v604 = vsel %vm543, %v603, %v602
        %v605 = vrot.slane %v481, 4
        %v606 = vsel %vm546, %v605, %v604
        %v607 = vrot.slane %v483, 3
        %v608 = vsel %vm549, %v607, %v606
        %v609 = vrot.slane %v485, 2
        %v610 = vsel %vm552, %v609, %v608
        %v611 = vrot.slane %v487, 1
        %v612 = vsel %vm555, %v611, %v610
        %v613 = vrot.slane %v491, 7
        %v614 = vsel %vm537, %v613, %v489
        %v615 = vrot.slane %v493, 6
        %v616 = vsel %vm540, %v615, %v614
        %v617 = vrot.slane %v495, 5
        %v618 = vsel %vm543, %v617, %v616
        %v619 = vrot.slane %v497, 4
        %v620 = vsel %vm546, %v619, %v618
        %v621 = vrot.slane %v499, 3
        %v622 = vsel %vm549, %v621, %v620
        %v623 = vrot.slane %v501, 2
        %v624 = vsel %vm552, %v623, %v622
        %v625 = vrot.slane %v503, 1
        %v626 = vsel %vm555, %v625, %v624
        %v627 = vrot.slane %v507, 7
        %v628 = vsel %vm537, %v627, %v505
        %v629 = vrot.slane %v509, 6
        %v630 = vsel %vm540, %v629, %v628
        %v631 = vrot.slane %v511, 5
        %v632 = vsel %vm543, %v631, %v630
        %v633 = vrot.slane %v513, 4
        %v634 = vsel %vm546, %v633, %v632
        %v635 = vrot.slane %v515, 3
        %v636 = vsel %vm549, %v635, %v634
        %v637 = vrot.slane %v517, 2
        %v638 = vsel %vm552, %v637, %v636
        %v639 = vrot.slane %v519, 1
        %v640 = vsel %vm555, %v639, %v638
        %v641 = vrot.slane %v523, 7
        %v642 = vsel %vm537, %v641, %v521
        %v643 = vrot.slane %v525, 6
        %v644 = vsel %vm540, %v643, %v642
        %v645 = vrot.slane %v527, 5
        %v646 = vsel %vm543, %v645, %v644
        %v647 = vrot.slane %v529, 4
        %v648 = vsel %vm546, %v647, %v646
        %v649 = vrot.slane %v531, 3
        %v650 = vsel %vm549, %v649, %v648
        %v651 = vrot.slane %v533, 2
        %v652 = vsel %vm552, %v651, %v650
        %v653 = vrot.slane %v535, 1
        %v654 = vsel %vm555, %v653, %v652
        %v663 = vcombine.low %v556, %v584
        %v664 = vcombine.high %v556, %v584
        %v666 = vunpack.c.l.s4 1983009808
        %v667 = vunpack.c.0.s8 %v666
        %v668 = vlaneseq
        %v669 = vshrl.u32 %v668, 7
        %v670 = vsub.s32 %v667, %v669
        %v671 = vrot.slane %v663, %v670
        %v673 = vunpack.c.l.s4 1983009808
        %v674 = vunpack.c.0.s8 %v673
        %v675 = vlaneseq
        %v676 = vshrl.u32 %v675, 7
        %v677 = vsub.s32 %v674, %v676
        %v678 = vrot.slane %v664, %v677
        %v679 = vcombine.low %v570, %v598
        %v680 = vcombine.high %v570, %v598
        %v682 = vunpack.c.l.s4 1983009808
        %v683 = vunpack.c.0.s8 %v682
        %v684 = vlaneseq
        %v685 = vshrl.u32 %v684, 7
        %v686 = vsub.s32 %v683, %v685
        %v687 = vrot.slane %v679, %v686
        %v689 = vunpack.c.l.s4 1983009808
        %v690 = vunpack.c.0.s8 %v689
        %v691 = vlaneseq
        %v692 = vshrl.u32 %v691, 7
        %v693 = vsub.s32 %v690, %v692
        %v694 = vrot.slane %v680, %v693
        %v695 = vcombine.low %v612, %v640
        %v696 = vcombine.high %v612, %v640
        %v698 = vunpack.c.l.s4 1983009808
        %v699 = vunpack.c.0.s8 %v698
        %v700 = vlaneseq
        %v701 = vshrl.u32 %v700, 7
        %v702 = vsub.s32 %v699, %v701
        %v703 = vrot.slane %v695, %v702
        %v705 = vunpack.c.l.s4 1983009808
        %v706 = vunpack.c.0.s8 %v705
        %v707 = vlaneseq
        %v708 = vshrl.u32 %v707, 7
        %v709 = vsub.s32 %v706, %v708
        %v710 = vrot.slane %v696, %v709
        %v711 = vcombine.low %v626, %v654
        %v712 = vcombine.high %v626, %v654
        %v714 = vunpack.c.l.s4 1983009808
        %v715 = vunpack.c.0.s8 %v714
        %v716 = vlaneseq
        %v717 = vshrl.u32 %v716, 7
        %v718 = vsub.s32 %v715, %v717
        %v719 = vrot.slane %v711, %v718
        %v721 = vunpack.c.l.s4 1983009808
        %v722 = vunpack.c.0.s8 %v721
        %v723 = vlaneseq
        %v724 = vshrl.u32 %v723, 7
        %v725 = vsub.s32 %v722, %v724
        %v726 = vrot.slane %v712, %v725
        %v727 = vcombine.low %v671, %v687
        %v728 = vcombine.high %v671, %v687
        %v730 = vunpack.c.l.s4 1934713408
        %v731 = vunpack.c.0.s8 %v730
        %v732 = vlaneseq
        %v733 = vshrl.u32 %v732, 7
        %v734 = vsub.s32 %v731, %v733
        %v735 = vrot.slane %v727, %v734
        %v737 = vunpack.c.l.s4 1934713408
        %v738 = vunpack.c.0.s8 %v737
        %v739 = vlaneseq
        %v740 = vshrl.u32 %v739, 7
        %v741 = vsub.s32 %v738, %v740
        %v742 = vrot.slane %v728, %v741
        %v743 = vcombine.low %v678, %v694
        %v744 = vcombine.high %v678, %v694
        %v746 = vunpack.c.l.s4 1934713408
        %v747 = vunpack.c.0.s8 %v746
        %v748 = vlaneseq
        %v749 = vshrl.u32 %v748, 7
        %v750 = vsub.s32 %v747, %v749
        %v751 = vrot.slane %v743, %v750
        %v753 = vunpack.c.l.s4 1934713408
        %v754 = vunpack.c.0.s8 %v753
        %v755 = vlaneseq
        %v756 = vshrl.u32 %v755, 7
        %v757 = vsub.s32 %v754, %v756
        %v758 = vrot.slane %v744, %v757
        %v759 = vcombine.low %v703, %v719
        %v760 = vcombine.high %v703, %v719
        %v762 = vunpack.c.l.s4 1934713408
        %v763 = vunpack.c.0.s8 %v762
        %v764 = vlaneseq
        %v765 = vshrl.u32 %v764, 7
        %v766 = vsub.s32 %v763, %v765
        %v767 = vrot.slane %v759, %v766
        %v769 = vunpack.c.l.s4 1934713408
        %v770 = vunpack.c.0.s8 %v769
        %v771 = vlaneseq
        %v772 = vshrl.u32 %v771, 7
        %v773 = vsub.s32 %v770, %v772
        %v774 = vrot.slane %v760, %v773
        %v775 = vcombine.low %v710, %v726
        %v776 = vcombine.high %v710, %v726
        %v778 = vunpack.c.l.s4 1934713408
        %v779 = vunpack.c.0.s8 %v778
        %v780 = vlaneseq
        %v781 = vshrl.u32 %v780, 7
        %v782 = vsub.s32 %v779, %v781
        %v783 = vrot.slane %v775, %v782
        %v785 = vunpack.c.l.s4 1934713408
        %v786 = vunpack.c.0.s8 %v785
        %v787 = vlaneseq
        %v788 = vshrl.u32 %v787, 7
        %v789 = vsub.s32 %v786, %v788
        %v790 = vrot.slane %v776, %v789
        %v791 = vcombine.low %v735, %v767
        %v792 = vcombine.high %v735, %v767
        %v793 = vcombine.low %v742, %v774
        %v794 = vcombine.high %v742, %v774
        %v795 = vcombine.low %v751, %v783
        %v796 = vcombine.high %v751, %v783
        %v797 = vcombine.low %v758, %v790
        %v798 = vcombine.high %v758, %v790
        %vm799 = vcmask 15360
        %v800 = vsel %vm799, %v791, -inf
        %801 = vmax.xlane.f32.xlu0 %v800
        %v802 = vpop.xlane.xlu0 %801
        %v803 = vsel %vm799, %v792, -inf
        %804 = vmax.xlane.f32.xlu0 %v803
        %v805 = vpop.xlane.xlu0 %804
        %v806 = vsel %vm799, %v793, -inf
        %807 = vmax.xlane.f32.xlu0 %v806
        %v808 = vpop.xlane.xlu0 %807
        %v809 = vsel %vm799, %v794, -inf
        %810 = vmax.xlane.f32.xlu0 %v809
        %v811 = vpop.xlane.xlu0 %810
        %v812 = vsel %vm799, %v795, -inf
        %813 = vmax.xlane.f32.xlu0 %v812
        %v814 = vpop.xlane.xlu0 %813
        %v815 = vsel %vm799, %v796, -inf
        %816 = vmax.xlane.f32.xlu0 %v815
        %v817 = vpop.xlane.xlu0 %816
        %v818 = vsel %vm799, %v797, -inf
        %819 = vmax.xlane.f32.xlu0 %v818
        %v820 = vpop.xlane.xlu0 %819
        %v821 = vsel %vm799, %v798, -inf
        %822 = vmax.xlane.f32.xlu0 %v821
        %v823 = vpop.xlane.xlu0 %822
        %v824 = vmax.f32 %v802, 0.0
        %v825 = vmax.f32 %v805, 0.0
        %v826 = vmax.f32 %v808, 0.0
        %v827 = vmax.f32 %v811, 0.0
        %v828 = vmax.f32 %v814, 0.0
        %v829 = vmax.f32 %v817, 0.0
        %v830 = vmax.f32 %v820, 0.0
        %v831 = vmax.f32 %v823, 0.0
        %v840 = vlaneseq
        %v841 = vand.u32 %v840, 127
        %v842 = vlaneseq
        %v843 = vshrl.u32 %v842, 7
        %v844 = vsub.s32 %v841, %v843
        %v845 = vrot.slane %v824, %v844
        %v846 = vlaneseq
        %v847 = vshrl.u32 %v846, 7
        %v848 = vsub.s32 %v841, %v847
        %v849 = vrot.slane %v825, %v848
        %v850 = vlaneseq
        %v851 = vshrl.u32 %v850, 7
        %v852 = vsub.s32 %v841, %v851
        %v853 = vrot.slane %v826, %v852
        %v854 = vlaneseq
        %v855 = vshrl.u32 %v854, 7
        %v856 = vsub.s32 %v841, %v855
        %v857 = vrot.slane %v827, %v856
        %v858 = vlaneseq
        %v859 = vshrl.u32 %v858, 7
        %v860 = vsub.s32 %v841, %v859
        %v861 = vrot.slane %v828, %v860
        %v862 = vlaneseq
        %v863 = vshrl.u32 %v862, 7
        %v864 = vsub.s32 %v841, %v863
        %v865 = vrot.slane %v829, %v864
        %v866 = vlaneseq
        %v867 = vshrl.u32 %v866, 7
        %v868 = vsub.s32 %v841, %v867
        %v869 = vrot.slane %v830, %v868
        %v870 = vlaneseq
        %v871 = vshrl.u32 %v870, 7
        %v872 = vsub.s32 %v841, %v871
        %v873 = vrot.slane %v831, %v872
        %v874 = vsel %vm537, %v849, %v845
        %v875 = vsel %vm540, %v853, %v874
        %v876 = vsel %vm543, %v857, %v875
        %v877 = vsel %vm546, %v861, %v876
        %v878 = vsel %vm549, %v865, %v877
        %v879 = vsel %vm552, %v869, %v878
        %v880 = vsel %vm555, %v873, %v879
        %vm882 = vcmask 64512
        %883 = vst.msk [vmem:[%s219] sm:$0xff] %vm882, %v880
        %s884 = sand.u32 %s114, 1
        %s885 = scalar_lea.sflag [#allocation3], %s884
        %s886 = sand.u32 %s114, 1
        %s887 = smul.addr %s886, 8
        %s888 = scalar_lea.vmem [#allocation2], %s887
        // Predicated region
        $region29: #{tpu_custom_call.1} parent=27 // pred_check
          %p889 = pneg %p124
        $region30: #{tpu_custom_call.1} parent=27 // pred_check_branch
          %891 = sbr.rel (%p889) target = $region32
        $region31: #{tpu_custom_call.1} parent=27 // pred_region
          %s893 = ssub.s32 128, 128
          %894 = vsyncadd %s885, %s893
          %s895 = sadd.s32 %s24, %s23
          %s896 = sadd.s32 %s895, %s22
          %s897 = smul.addr %s896, 128
          %s898 = scalar_lea.hbm %s2, %s897
          %s900 = sshll.u32 %s888, 4
          %s901 = int_to_ptr.vmem [resolvable:$true] %s900
          %903 = dma.vmem_to_hbm [thread:$0]  %s901, 128, %s898, %s885
        $region32: #{tpu_custom_call.1} parent=27 // pred_fallthru
          _
      $region28: #{tpu_custom_call.1} parent=5 // pred_fallthru
        _
      %p904 = scmp.le.s32.totalorder 2, %s11
      // Predicated region
      $region33: #{tpu_custom_call.1} parent=5 // pred_check
        %p905 = pneg %p904
      $region34: #{tpu_custom_call.1} parent=5 // pred_check_branch
        %907 = sbr.rel (%p905) target = $region36
      $region35: #{tpu_custom_call.1} parent=5 // pred_region
        %s908 = ssub.s32 %s11, 2
        // Predicated region
        $region37: #{tpu_custom_call.1} parent=35 // pred_check
          %p909 = pneg %p130
        $region38: #{tpu_custom_call.1} parent=35 // pred_check_branch
          %911 = sbr.rel (%p909) target = $region40
        $region39: #{tpu_custom_call.1} parent=35 // pred_region
          %s912 = sand.u32 %s115, 1
          %s913 = scalar_lea.sflag [#allocation3], %s912
          %s914 = sand.u32 %s115, 1
          %s915 = smul.addr %s914, 8
          %s916 = scalar_lea.vmem [#allocation2], %s915
          %917 = dma.done %s913, 128
        $region40: #{tpu_custom_call.1} parent=35 // pred_fallthru
          _
      $region36: #{tpu_custom_call.1} parent=5 // pred_fallthru
        _
    $region6: #{tpu_custom_call.1} parent=1 // loop_footer
      %s15 = sadd.s32 1, %s11
    $region7: #{tpu_custom_call.1} parent=1 // loop_footer_branch
      %10 = sbr.rel target = $region3
    $region8: #{tpu_custom_call.1} parent=1 // loop_exit
      _
    %918 = vsyncpa [#allocation3], 1
    %s919 = scalar_lea.sflag [#allocation3], 1
    %920 = vsyncpa %s919, 1

</llo_original>
